<compile_context>
chip_gen: v5e
topology: v5e:2x2
jax: 0.10.0
libtpu: 0.0.40
codegen_flags: <defaults>
</compile_context>

<pallas_src>
import functools
import math

import jax
import jax.numpy as jnp
from jax.experimental import pallas as pl
from jax.experimental.pallas import tpu as pltpu

# log(clip(one_hot, 1e-4, 1)) == log(1e-4) * (1 - one_hot)
_NEG_LOG_1E4 = -math.log(1e-4)


def _nce_rce_kernel(pred_ref, labels_ref, out_ref, *, alpha, beta, n_rows, tile_n):
    logits = pred_ref[...].astype(jnp.float32)            # (TN, C)
    labels = labels_ref[...]                               # (TN, 1) int32
    tn, c = logits.shape

    # Row validity for the ragged last tile (no wrapper padding): rows past the
    # end of the array hold undefined data and are masked out with jnp.where.
    row_ids = pl.program_id(0) * tile_n + jax.lax.broadcasted_iota(
        jnp.int32, (tn, 1), 0)
    valid = row_ids < n_rows                                # (TN, 1) bool

    # Class ids as a single lane row; the compare broadcasts over sublanes.
    class_ids = jax.lax.broadcasted_iota(jnp.int32, (1, c), 1)
    is_label = class_ids == labels                          # (TN, C) bool

    # Numerically stable shifted logits / softmax pieces.
    m = jnp.max(logits, axis=1, keepdims=True)              # (TN, 1)
    shifted = logits - m                                    # (TN, C)
    exps = jnp.exp(shifted)                                 # (TN, C)  (EUP)
    sumexp = jnp.sum(exps, axis=1, keepdims=True)           # (TN, 1)
    lse = jnp.log(sumexp)                                   # (TN, 1)
    inv_sumexp = 1.0 / sumexp                               # (TN, 1)

    # Label-logit extraction: one select + row reduce (replaces onehot*logp).
    shifted_y = jnp.sum(jnp.where(is_label, shifted, 0.0), axis=1, keepdims=True)

    # NormalizedCrossEntropy: -logp_y / -sum(logp), with logp = shifted - lse.
    nce_num = lse - shifted_y                               # (TN, 1)
    nce_den = c * lse - jnp.sum(shifted, axis=1, keepdims=True)
    nce = nce_num / nce_den                                 # (TN, 1)

    # ReverseCrossEntropy: -log(1e-4) * sum_{j != y} clip(p_j, 1e-7, 1).
    p_clip_sum = jnp.sum(jnp.clip(exps * inv_sumexp, 1e-7, 1.0),
                         axis=1, keepdims=True)             # (TN, 1)
    p_y = jnp.clip(jnp.exp(shifted_y) * inv_sumexp, 1e-7, 1.0)
    rce = _NEG_LOG_1E4 * (p_clip_sum - p_y)                 # (TN, 1)

    partial = (alpha * jnp.sum(jnp.where(valid, nce, 0.0))
               + beta * jnp.sum(jnp.where(valid, rce, 0.0)))

    # Lane-dense per-tile partial slab; wrapper reads [i, 0, 0].
    out_ref[...] = jnp.full(out_ref.shape, partial, dtype=jnp.float32)


def _vmem_budgets():
    """(vmem_limit_bytes, tile_budget_bytes) sized to the running generation."""
    try:
        cap = int(pltpu.get_tpu_info().vmem_capacity_bytes)
    except Exception:
        cap = 64 * 1024 * 1024          # v7x-safe fallback
    vmem_limit = min(cap - 8 * 1024 * 1024, 100 * 1024 * 1024)
    tile_budget = int(vmem_limit * 0.70)
    return vmem_limit, tile_budget


def _pick_tile_n(n, c, in_itemsize, tile_budget_bytes):
    """Largest sublane-aligned batch tile whose working set (double-buffered
    native-dtype input + ~5 live (TN,C) f32 intermediates) fits the budget."""
    c_pad = -(-c // 128) * 128                       # classes pad to 128 lanes
    bytes_per_row = 2 * in_itemsize * c_pad + 5 * 4 * c_pad + 16
    if 8 * bytes_per_row > tile_budget_bytes:
        # TODO(synk): add a class-tiled (flash-softmax style) path for very large C.
        raise ValueError(
            f"num_classes={c} too large for a single class tile within the "
            f"VMEM budget ({tile_budget_bytes} bytes)")
    tile = tile_budget_bytes // bytes_per_row
    tile = int(min(tile, 8192, max(n, 8)))
    tile = max(8, (tile // 8) * 8)                   # sublane-aligned
    return tile


def nce_and_rce(pred, labels, alpha=1.0, beta=1.0, tile_n=None):
    """NCEandRCE(alpha, beta, num_classes).forward(pred, labels).

    pred:   (N, C) float logits (any float dtype; cast to f32 in-kernel)
    labels: (N,)   int class ids in [0, C)
    returns scalar float32 loss
    """
    n, c = pred.shape
    vmem_limit, tile_budget = _vmem_budgets()
    if tile_n is None:
        tile_n = _pick_tile_n(n, c, jnp.dtype(pred.dtype).itemsize, tile_budget)
    num_tiles = -(-n // tile_n)

    labels2d = labels.astype(jnp.int32).reshape(n, 1)

    kernel = functools.partial(
        _nce_rce_kernel,
        alpha=float(alpha), beta=float(beta), n_rows=n, tile_n=tile_n)

    partials = pl.pallas_call(
        kernel,
        out_shape=jax.ShapeDtypeStruct((num_tiles, 8, 128), jnp.float32),
        grid_spec=pltpu.PrefetchScalarGridSpec(
            num_scalar_prefetch=0,
            grid=(num_tiles,),
            in_specs=[
                pl.BlockSpec((tile_n, c), lambda i: (i, 0)),
                pl.BlockSpec((tile_n, 1), lambda i: (i, 0)),
            ],
            out_specs=pl.BlockSpec((1, 8, 128), lambda i: (i, 0, 0)),
        ),
        compiler_params=pltpu.CompilerParams(
            # independent batch tiles -> shardable across both TCs on v7x
            dimension_semantics=("parallel",),
            vmem_limit_bytes=int(vmem_limit),
        ),
    )(pred, labels2d)

    # final reduction + mean in the wrapper (1/N here, not in the kernel)
    return jnp.sum(partials[:, 0, 0]) / jnp.float32(n)


def _reference(pred, labels, alpha, beta, num_classes):
    pred = pred.astype(jnp.float32)
    logp = jax.nn.log_softmax(pred, axis=1)
    oh = jax.nn.one_hot(labels, num_classes, dtype=jnp.float32)
    nce = -jnp.sum(oh * logp, axis=1) / -jnp.sum(logp, axis=1)
    p = jnp.clip(jax.nn.softmax(pred, axis=1), 1e-7, 1.0)
    rce = -jnp.sum(p * jnp.log(jnp.clip(oh, 1e-4, 1.0)), axis=1)
    return alpha * nce.mean() + beta * rce.mean()


if __name__ == "__main__":
    key = jax.random.PRNGKey(0)
    k1, k2, k3, k4 = jax.random.split(key, 4)
    alpha, beta = 1.0, 1.0

    # Test 1: small single-tile case (32 samples, 10 classes).
    N, C = 32, 10
    pred = jax.random.normal(k1, (N, C), dtype=jnp.float32)
    labels = jax.random.randint(k2, (N,), 0, C, dtype=jnp.int32)
    loss = jax.block_until_ready(nce_and_rce(pred, labels, alpha=alpha, beta=beta))
    ref = _reference(pred, labels, alpha, beta, C)
    assert jnp.allclose(loss, ref, rtol=1e-5, atol=1e-5), (loss, ref)

    # Test 2: multi-tile with a ragged last tile (exercises in-kernel row mask).
    N2, C2 = 29, 10
    pred2 = jax.random.normal(k3, (N2, C2), dtype=jnp.float32)
    labels2 = jax.random.randint(k4, (N2,), 0, C2, dtype=jnp.int32)
    loss2 = jax.block_until_ready(
        nce_and_rce(pred2, labels2, alpha=alpha, beta=beta, tile_n=8))
    ref2 = _reference(pred2, labels2, alpha, beta, C2)
    assert jnp.allclose(loss2, ref2, rtol=1e-5, atol=1e-5), (loss2, ref2)

    print("KERNEL_OK")
</pallas_src>

<mosaic_0001>
module attributes {stable_mosaic.version = 11 : i64} {
  func.func @_nce_rce_kernel(%arg0: i32, %arg1: memref<32x10xf32, #tpu.memory_space<vmem>>, %arg2: memref<32x1xi32, #tpu.memory_space<vmem>>, %arg3: memref<1x8x128xf32, #tpu.memory_space<vmem>>) attributes {dimension_semantics = [#tpu.dimension_semantics<parallel>], iteration_bounds = array<i64: 1>, scalar_prefetch = 0 : i64, scratch_operands = 0 : i64, tpu.core_type = #tpu.core_type<tc>, window_params = [{transform_indices = @transform_0, window_bounds = array<i64: 32, 10>}, {transform_indices = @transform_1, window_bounds = array<i64: 32, 1>}, {transform_indices = @transform_2, window_bounds = array<i64: 1, 8, 128>}]} {
    %c0 = arith.constant 0 : index
    %c0_0 = arith.constant 0 : index
    %0 = vector.load %arg1[%c0, %c0_0] : memref<32x10xf32, #tpu.memory_space<vmem>>, vector<32x10xf32>
    %c0_1 = arith.constant 0 : index
    %c0_2 = arith.constant 0 : index
    %1 = vector.load %arg2[%c0_1, %c0_2] : memref<32x1xi32, #tpu.memory_space<vmem>>, vector<32x1xi32>
    %c32_i32 = arith.constant 32 : i32
    %2 = arith.muli %arg0, %c32_i32 : i32
    %3 = tpu.iota {dimensions = array<i32: 0>} : vector<32x1xi32>
    %4 = vector.broadcast %2 : i32 to vector<32x1xi32>
    %5 = arith.addi %4, %3 : vector<32x1xi32>
    %c32_i32_3 = arith.constant 32 : i32
    %6 = vector.broadcast %c32_i32_3 : i32 to vector<32x1xi32>
    %7 = arith.cmpi slt, %5, %6 : vector<32x1xi32>
    %8 = tpu.iota {dimensions = array<i32: 1>} : vector<1x10xi32>
    %9 = vector.broadcast %8 : vector<1x10xi32> to vector<32x10xi32>
    %10 = vector.broadcast %1 : vector<32x1xi32> to vector<32x10xi32>
    %11 = arith.cmpi eq, %9, %10 : vector<32x10xi32>
    %cst = arith.constant dense<0xFF800000> : vector<32xf32>
    %12 = vector.multi_reduction <maximumf>, %0, %cst [1] : vector<32x10xf32> to vector<32xf32>
    %13 = vector.shape_cast %12 : vector<32xf32> to vector<32x1xf32>
    %14 = vector.broadcast %13 : vector<32x1xf32> to vector<32x10xf32>
    %15 = arith.subf %0, %14 : vector<32x10xf32>
    %16 = math.exp %15 : vector<32x10xf32>
    %cst_4 = arith.constant dense<0.000000e+00> : vector<32xf32>
    %17 = vector.multi_reduction <add>, %16, %cst_4 [1] : vector<32x10xf32> to vector<32xf32>
    %18 = vector.shape_cast %17 : vector<32xf32> to vector<32x1xf32>
    %19 = math.log %18 : vector<32x1xf32>
    %cst_5 = arith.constant 1.000000e+00 : f32
    %20 = vector.broadcast %cst_5 : f32 to vector<32x1xf32>
    %21 = arith.divf %20, %18 : vector<32x1xf32>
    %cst_6 = arith.constant 0.000000e+00 : f32
    %22 = vector.broadcast %cst_6 : f32 to vector<32x10xf32>
    %23 = arith.select %11, %15, %22 : vector<32x10xi1>, vector<32x10xf32>
    %cst_7 = arith.constant dense<0.000000e+00> : vector<32xf32>
    %24 = vector.multi_reduction <add>, %23, %cst_7 [1] : vector<32x10xf32> to vector<32xf32>
    %25 = vector.shape_cast %24 : vector<32xf32> to vector<32x1xf32>
    %26 = arith.subf %19, %25 : vector<32x1xf32>
    %cst_8 = arith.constant 1.000000e+01 : f32
    %27 = vector.broadcast %cst_8 : f32 to vector<32x1xf32>
    %28 = arith.mulf %27, %19 : vector<32x1xf32>
    %cst_9 = arith.constant dense<0.000000e+00> : vector<32xf32>
    %29 = vector.multi_reduction <add>, %15, %cst_9 [1] : vector<32x10xf32> to vector<32xf32>
    %30 = vector.shape_cast %29 : vector<32xf32> to vector<32x1xf32>
    %31 = arith.subf %28, %30 : vector<32x1xf32>
    %32 = arith.divf %26, %31 : vector<32x1xf32>
    %33 = vector.broadcast %21 : vector<32x1xf32> to vector<32x10xf32>
    %34 = arith.mulf %16, %33 : vector<32x10xf32>
    %cst_10 = arith.constant 1.000000e-07 : f32
    %cst_11 = arith.constant 1.000000e+00 : f32
    %35 = vector.broadcast %cst_10 : f32 to vector<32x10xf32>
    %36 = arith.maximumf %35, %34 : vector<32x10xf32>
    %37 = vector.broadcast %cst_11 : f32 to vector<32x10xf32>
    %38 = arith.minimumf %37, %36 : vector<32x10xf32>
    %cst_12 = arith.constant dense<0.000000e+00> : vector<32xf32>
    %39 = vector.multi_reduction <add>, %38, %cst_12 [1] : vector<32x10xf32> to vector<32xf32>
    %40 = vector.shape_cast %39 : vector<32xf32> to vector<32x1xf32>
    %41 = math.exp %25 : vector<32x1xf32>
    %42 = arith.mulf %41, %21 : vector<32x1xf32>
    %cst_13 = arith.constant 1.000000e-07 : f32
    %cst_14 = arith.constant 1.000000e+00 : f32
    %43 = vector.broadcast %cst_13 : f32 to vector<32x1xf32>
    %44 = arith.maximumf %43, %42 : vector<32x1xf32>
    %45 = vector.broadcast %cst_14 : f32 to vector<32x1xf32>
    %46 = arith.minimumf %45, %44 : vector<32x1xf32>
    %47 = arith.subf %40, %46 : vector<32x1xf32>
    %cst_15 = arith.constant 9.21034049 : f32
    %48 = vector.broadcast %cst_15 : f32 to vector<32x1xf32>
    %49 = arith.mulf %48, %47 : vector<32x1xf32>
    %cst_16 = arith.constant 0.000000e+00 : f32
    %50 = vector.broadcast %cst_16 : f32 to vector<32x1xf32>
    %51 = arith.select %7, %32, %50 : vector<32x1xi1>, vector<32x1xf32>
    %52 = vector.shape_cast %51 : vector<32x1xf32> to vector<1x32x1xf32>
    %cst_17 = arith.constant dense<0.000000e+00> : vector<1xf32>
    %53 = vector.multi_reduction <add>, %52, %cst_17 [1, 2] : vector<1x32x1xf32> to vector<1xf32>
    %54 = vector.shape_cast %53 : vector<1xf32> to vector<1x1x1xf32>
    %55 = vector.extract %54[0, 0, 0] : f32 from vector<1x1x1xf32>
    %cst_18 = arith.constant 1.000000e+00 : f32
    %56 = arith.mulf %cst_18, %55 : f32
    %cst_19 = arith.constant 0.000000e+00 : f32
    %57 = vector.broadcast %cst_19 : f32 to vector<32x1xf32>
    %58 = arith.select %7, %49, %57 : vector<32x1xi1>, vector<32x1xf32>
    %59 = vector.shape_cast %58 : vector<32x1xf32> to vector<1x32x1xf32>
    %cst_20 = arith.constant dense<0.000000e+00> : vector<1xf32>
    %60 = vector.multi_reduction <add>, %59, %cst_20 [1, 2] : vector<1x32x1xf32> to vector<1xf32>
    %61 = vector.shape_cast %60 : vector<1xf32> to vector<1x1x1xf32>
    %62 = vector.extract %61[0, 0, 0] : f32 from vector<1x1x1xf32>
    %cst_21 = arith.constant 1.000000e+00 : f32
    %63 = arith.mulf %cst_21, %62 : f32
    %64 = arith.addf %56, %63 : f32
    %65 = vector.broadcast %64 : f32 to vector<1x8x128xf32>
    %c0_22 = arith.constant 0 : index
    %c0_23 = arith.constant 0 : index
    %c0_24 = arith.constant 0 : index
    %66 = vector.load %arg3[%c0_22, %c0_23, %c0_24] : memref<1x8x128xf32, #tpu.memory_space<vmem>>, vector<1x8x128xf32>
    tpu.vector_store %arg3[%c0_22, %c0_23, %c0_24], %65 {strides = array<i32>} : memref<1x8x128xf32, #tpu.memory_space<vmem>>, vector<1x8x128xf32>,
    return
  }
  func.func @transform_0(%arg0: i32) -> (i32, i32) {
    %c0_i32 = arith.constant 0 : i32
    %c0_i32_0 = arith.constant 0 : i32
    return %arg0, %c0_i32 : i32, i32
  }
  func.func @transform_1(%arg0: i32) -> (i32, i32) {
    %c0_i32 = arith.constant 0 : i32
    %c0_i32_0 = arith.constant 0 : i32
    return %arg0, %c0_i32 : i32, i32
  }
  func.func @transform_2(%arg0: i32) -> (i32, i32, i32) {
    %c0_i32 = arith.constant 0 : i32
    %c0_i32_0 = arith.constant 0 : i32
    %c0_i32_1 = arith.constant 0 : i32
    return %arg0, %c0_i32, %c0_i32_0 : i32, i32, i32
  }
}

</mosaic_0001>

<llo_original>
// kernel: tpu_custom_call.1
$region0: #{tpu_custom_call.1}
  #allocation0 [shape = 'u32[]', space=smem, size = 0x4, offset = 0x4, fixed_abs, tag = 'smem constant byte address 0x4 - core index']
  #allocation1 [shape = 'u32[72,128]{1,0:T(1,128)}', space=vmem, size = 0x9000, scoped, tag = 'internal scratch']
  %s0 = inlined_call_operand.vmem [shape: f32[32,10], index: 0, kind: input, shape index: {}]
  %s1 = inlined_call_operand.vmem [shape: s32[32,1], index: 1, kind: input, shape index: {}]
  %s2 = inlined_call_operand.hbm [shape: f32[1,8,128], index: 2, kind: output, shape index: {}]
  %s3 = sld [smem:[#allocation0]]
  $region18: #{tpu_custom_call.1} parent=0
    _
  %s5 = ssub.s32 1, %s3
  %s6 = scalar_select 0, %s5, %s3
  $region1: #{tpu_custom_call.1} parent=0
    #allocation2 [shape = 'u8[4096]{0}', space=vmem, size = 0x1000, scoped, tag = 'output window, operand 0, single buffered']
    #allocation3 [shape = 's32[1]{0}', space=sflag, size = 0x4, scoped, tag = 'scoped memory for tpu_custom_call.1']
    %7 = vsyncpa [#allocation3], 0
    // Predicated region
    $region2: #{tpu_custom_call.1} parent=1 // pred_check
      _
    $region3: #{tpu_custom_call.1} parent=1 // pred_check_branch
      %9 = sbr.rel (0) target = $region5
    $region4: #{tpu_custom_call.1} parent=1 // pred_region
      _
    $region5: #{tpu_custom_call.1} parent=1 // pred_fallthru
      _
    // Predicated region
    $region6: #{tpu_custom_call.1} parent=1 // pred_check
      _
    $region7: #{tpu_custom_call.1} parent=1 // pred_check_branch
      %11 = sbr.rel (0) target = $region9
    $region8: #{tpu_custom_call.1} parent=1 // pred_region
      _
    $region9: #{tpu_custom_call.1} parent=1 // pred_fallthru
      _
    %v12 = vld [vmem:[%s0] sm:$0xff]
    %v13 = vld [vmem:[%s0 + $0x8] sm:$0xff]
    %v14 = vld [vmem:[%s0 + $0x10] sm:$0xff]
    %v15 = vld [vmem:[%s0 + $0x18] sm:$0xff]
    %v16 = vld [vmem:[%s1] sm:$0xff]
    %v17 = vld [vmem:[%s1 + $0x8] sm:$0xff]
    %v18 = vld [vmem:[%s1 + $0x10] sm:$0xff]
    %v19 = vld [vmem:[%s1 + $0x18] sm:$0xff]
    %s20 = smul.u32 0, 32
    %v21 = vlaneseq
    %v22 = vshrl.u32 %v21, 7
    %v23 = vadd.s32 %v22, 8
    %v24 = vadd.s32 %v22, 16
    %v25 = vadd.s32 %v22, 24
    %v26 = vstv %s20
    %v27 = vadd.s32 %v26, %v22
    %v28 = vadd.s32 %v26, %v23
    %v29 = vadd.s32 %v26, %v24
    %v30 = vadd.s32 %v26, %v25
    %vm31 = vcmp.lt.s32.totalorder %v27, 32
    %vm32 = vcmp.lt.s32.totalorder %v28, 32
    %vm33 = vcmp.lt.s32.totalorder %v29, 32
    %vm34 = vcmp.lt.s32.totalorder %v30, 32
    %v35 = vlaneseq
    %v36 = vand.u32 %v35, 127
    %37 = vset.pattern.permute.xlu0 0
    %38 = vperm.xlu0 %37, %v16
    %v39 = vpop.permute.xlu0 %38
    %40 = vset.pattern.permute.xlu0 0
    %41 = vperm.xlu0 %40, %v17
    %v42 = vpop.permute.xlu0 %41
    %43 = vset.pattern.permute.xlu0 0
    %44 = vperm.xlu0 %43, %v18
    %v45 = vpop.permute.xlu0 %44
    %46 = vset.pattern.permute.xlu0 0
    %47 = vperm.xlu0 %46, %v19
    %v48 = vpop.permute.xlu0 %47
    %vm49 = vcmp.eq.s32.totalorder %v36, %v39
    %vm50 = vcmp.eq.s32.totalorder %v36, %v42
    %vm51 = vcmp.eq.s32.totalorder %v36, %v45
    %vm52 = vcmp.eq.s32.totalorder %v36, %v48
    %vm53 = vcmask 80896
    %v54 = vsel %vm53, %v12, -inf
    %55 = vmax.xlane.f32.xlu0 %v54
    %v56 = vpop.xlane.xlu0 %55
    %v57 = vsel %vm53, %v13, -inf
    %58 = vmax.xlane.f32.xlu0 %v57
    %v59 = vpop.xlane.xlu0 %58
    %v60 = vsel %vm53, %v14, -inf
    %61 = vmax.xlane.f32.xlu0 %v60
    %v62 = vpop.xlane.xlu0 %61
    %v63 = vsel %vm53, %v15, -inf
    %64 = vmax.xlane.f32.xlu0 %v63
    %v65 = vpop.xlane.xlu0 %64
    %v66 = vsub.f32 %v12, %v56
    %v67 = vsub.f32 %v13, %v59
    %v68 = vsub.f32 %v14, %v62
    %v69 = vsub.f32 %v15, %v65
    %v70 = vmul.f32 %v66, 1.442695
    %v71 = vpow.pop %v70
    %v72 = vmul.f32 %v67, 1.442695
    %v73 = vpow.pop %v72
    %v74 = vmul.f32 %v68, 1.442695
    %v75 = vpow.pop %v74
    %v76 = vmul.f32 %v69, 1.442695
    %v77 = vpow.pop %v76
    %v78 = vsel %vm53, %v71, 0.0
    %79 = vadd.xlane.f32.xlu0 %v78
    %v80 = vpop.xlane.xlu0 %79
    %v81 = vsel %vm53, %v73, 0.0
    %82 = vadd.xlane.f32.xlu0 %v81
    %v83 = vpop.xlane.xlu0 %82
    %v84 = vsel %vm53, %v75, 0.0
    %85 = vadd.xlane.f32.xlu0 %v84
    %v86 = vpop.xlane.xlu0 %85
    %v87 = vsel %vm53, %v77, 0.0
    %88 = vadd.xlane.f32.xlu0 %v87
    %v89 = vpop.xlane.xlu0 %88
    %v90 = vlog2.pop %v80
    %v91 = vmul.f32 %v90, 0.6931472
    %v92 = vlog2.pop %v83
    %v93 = vmul.f32 %v92, 0.6931472
    %v94 = vlog2.pop %v86
    %v95 = vmul.f32 %v94, 0.6931472
    %v96 = vlog2.pop %v89
    %v97 = vmul.f32 %v96, 0.6931472
    %v98 = vrcp.pop %v80
    %v99 = vmul.f32 %v80, %v98
    %v100 = vsub.f32 1.0, %v99
    %v101 = vmul.f32 %v98, %v100
    %v102 = vadd.f32 %v98, %v101
    %vm103 = vweird.f32 %v80
    %vm104 = vweird.f32 %v98
    %vm105 = vmor %vm103, %vm104
    %v106 = vsel %vm105, %v98, %v102
    %v107 = vand.u32 2147483647, %v80
    %vm108 = vcmp.eq.f32.partialorder %v107, 8.507059e+37
    %v109 = vand.u32 %v80, 2147483648
    %v110 = vor.u32 1.1754944e-38, %v109
    %v111 = vsel %vm108, %v110, %v106
    %v112 = vmul.f32 1.0, %v111
    %v113 = vrcp.pop %v83
    %v114 = vmul.f32 %v83, %v113
    %v115 = vsub.f32 1.0, %v114
    %v116 = vmul.f32 %v113, %v115
    %v117 = vadd.f32 %v113, %v116
    %vm118 = vweird.f32 %v83
    %vm119 = vweird.f32 %v113
    %vm120 = vmor %vm118, %vm119
    %v121 = vsel %vm120, %v113, %v117
    %v122 = vand.u32 2147483647, %v83
    %vm123 = vcmp.eq.f32.partialorder %v122, 8.507059e+37
    %v124 = vand.u32 %v83, 2147483648
    %v125 = vor.u32 1.1754944e-38, %v124
    %v126 = vsel %vm123, %v125, %v121
    %v127 = vmul.f32 1.0, %v126
    %v128 = vrcp.pop %v86
    %v129 = vmul.f32 %v86, %v128
    %v130 = vsub.f32 1.0, %v129
    %v131 = vmul.f32 %v128, %v130
    %v132 = vadd.f32 %v128, %v131
    %vm133 = vweird.f32 %v86
    %vm134 = vweird.f32 %v128
    %vm135 = vmor %vm133, %vm134
    %v136 = vsel %vm135, %v128, %v132
    %v137 = vand.u32 2147483647, %v86
    %vm138 = vcmp.eq.f32.partialorder %v137, 8.507059e+37
    %v139 = vand.u32 %v86, 2147483648
    %v140 = vor.u32 1.1754944e-38, %v139
    %v141 = vsel %vm138, %v140, %v136
    %v142 = vmul.f32 1.0, %v141
    %v143 = vrcp.pop %v89
    %v144 = vmul.f32 %v89, %v143
    %v145 = vsub.f32 1.0, %v144
    %v146 = vmul.f32 %v143, %v145
    %v147 = vadd.f32 %v143, %v146
    %vm148 = vweird.f32 %v89
    %vm149 = vweird.f32 %v143
    %vm150 = vmor %vm148, %vm149
    %v151 = vsel %vm150, %v143, %v147
    %v152 = vand.u32 2147483647, %v89
    %vm153 = vcmp.eq.f32.partialorder %v152, 8.507059e+37
    %v154 = vand.u32 %v89, 2147483648
    %v155 = vor.u32 1.1754944e-38, %v154
    %v156 = vsel %vm153, %v155, %v151
    %v157 = vmul.f32 1.0, %v156
    %v158 = vsel %vm49, %v66, 0.0
    %v159 = vsel %vm50, %v67, 0.0
    %v160 = vsel %vm51, %v68, 0.0
    %v161 = vsel %vm52, %v69, 0.0
    %v162 = vsel %vm53, %v158, 0.0
    %163 = vadd.xlane.f32.xlu0 %v162
    %v164 = vpop.xlane.xlu0 %163
    %v165 = vsel %vm53, %v159, 0.0
    %166 = vadd.xlane.f32.xlu0 %v165
    %v167 = vpop.xlane.xlu0 %166
    %v168 = vsel %vm53, %v160, 0.0
    %169 = vadd.xlane.f32.xlu0 %v168
    %v170 = vpop.xlane.xlu0 %169
    %v171 = vsel %vm53, %v161, 0.0
    %172 = vadd.xlane.f32.xlu0 %v171
    %v173 = vpop.xlane.xlu0 %172
    %v174 = vsub.f32 %v91, %v164
    %v175 = vsub.f32 %v93, %v167
    %v176 = vsub.f32 %v95, %v170
    %v177 = vsub.f32 %v97, %v173
    %v178 = vmul.f32 %v91, 10.0
    %v179 = vmul.f32 %v93, 10.0
    %v180 = vmul.f32 %v95, 10.0
    %v181 = vmul.f32 %v97, 10.0
    %v182 = vsel %vm53, %v66, 0.0
    %183 = vadd.xlane.f32.xlu0 %v182
    %v184 = vpop.xlane.xlu0 %183
    %v185 = vsel %vm53, %v67, 0.0
    %186 = vadd.xlane.f32.xlu0 %v185
    %v187 = vpop.xlane.xlu0 %186
    %v188 = vsel %vm53, %v68, 0.0
    %189 = vadd.xlane.f32.xlu0 %v188
    %v190 = vpop.xlane.xlu0 %189
    %v191 = vsel %vm53, %v69, 0.0
    %192 = vadd.xlane.f32.xlu0 %v191
    %v193 = vpop.xlane.xlu0 %192
    %v194 = vsub.f32 %v178, %v184
    %v195 = vsub.f32 %v179, %v187
    %v196 = vsub.f32 %v180, %v190
    %v197 = vsub.f32 %v181, %v193
    %v198 = vrcp.pop %v194
    %v199 = vmul.f32 %v194, %v198
    %v200 = vsub.f32 1.0, %v199
    %v201 = vmul.f32 %v198, %v200
    %v202 = vadd.f32 %v198, %v201
    %vm203 = vweird.f32 %v194
    %vm204 = vweird.f32 %v198
    %vm205 = vmor %vm203, %vm204
    %v206 = vsel %vm205, %v198, %v202
    %v207 = vand.u32 2147483647, %v194
    %vm208 = vcmp.eq.f32.partialorder %v207, 8.507059e+37
    %v209 = vand.u32 %v194, 2147483648
    %v210 = vor.u32 1.1754944e-38, %v209
    %v211 = vsel %vm208, %v210, %v206
    %v212 = vmul.f32 %v174, %v211
    %v213 = vrcp.pop %v195
    %v214 = vmul.f32 %v195, %v213
    %v215 = vsub.f32 1.0, %v214
    %v216 = vmul.f32 %v213, %v215
    %v217 = vadd.f32 %v213, %v216
    %vm218 = vweird.f32 %v195
    %vm219 = vweird.f32 %v213
    %vm220 = vmor %vm218, %vm219
    %v221 = vsel %vm220, %v213, %v217
    %v222 = vand.u32 2147483647, %v195
    %vm223 = vcmp.eq.f32.partialorder %v222, 8.507059e+37
    %v224 = vand.u32 %v195, 2147483648
    %v225 = vor.u32 1.1754944e-38, %v224
    %v226 = vsel %vm223, %v225, %v221
    %v227 = vmul.f32 %v175, %v226
    %v228 = vrcp.pop %v196
    %v229 = vmul.f32 %v196, %v228
    %v230 = vsub.f32 1.0, %v229
    %v231 = vmul.f32 %v228, %v230
    %v232 = vadd.f32 %v228, %v231
    %vm233 = vweird.f32 %v196
    %vm234 = vweird.f32 %v228
    %vm235 = vmor %vm233, %vm234
    %v236 = vsel %vm235, %v228, %v232
    %v237 = vand.u32 2147483647, %v196
    %vm238 = vcmp.eq.f32.partialorder %v237, 8.507059e+37
    %v239 = vand.u32 %v196, 2147483648
    %v240 = vor.u32 1.1754944e-38, %v239
    %v241 = vsel %vm238, %v240, %v236
    %v242 = vmul.f32 %v176, %v241
    %v243 = vrcp.pop %v197
    %v244 = vmul.f32 %v197, %v243
    %v245 = vsub.f32 1.0, %v244
    %v246 = vmul.f32 %v243, %v245
    %v247 = vadd.f32 %v243, %v246
    %vm248 = vweird.f32 %v197
    %vm249 = vweird.f32 %v243
    %vm250 = vmor %vm248, %vm249
    %v251 = vsel %vm250, %v243, %v247
    %v252 = vand.u32 2147483647, %v197
    %vm253 = vcmp.eq.f32.partialorder %v252, 8.507059e+37
    %v254 = vand.u32 %v197, 2147483648
    %v255 = vor.u32 1.1754944e-38, %v254
    %v256 = vsel %vm253, %v255, %v251
    %v257 = vmul.f32 %v177, %v256
    %v258 = vmul.f32 %v71, %v112
    %v259 = vmul.f32 %v73, %v127
    %v260 = vmul.f32 %v75, %v142
    %v261 = vmul.f32 %v77, %v157
    %v262 = vmax.f32 %v258, 1e-07
    %v263 = vmax.f32 %v259, 1e-07
    %v264 = vmax.f32 %v260, 1e-07
    %v265 = vmax.f32 %v261, 1e-07
    %v266 = vmin.f32 %v262, 1.0
    %v267 = vmin.f32 %v263, 1.0
    %v268 = vmin.f32 %v264, 1.0
    %v269 = vmin.f32 %v265, 1.0
    %v270 = vsel %vm53, %v266, 0.0
    %271 = vadd.xlane.f32.xlu0 %v270
    %v272 = vpop.xlane.xlu0 %271
    %v273 = vsel %vm53, %v267, 0.0
    %274 = vadd.xlane.f32.xlu0 %v273
    %v275 = vpop.xlane.xlu0 %274
    %v276 = vsel %vm53, %v268, 0.0
    %277 = vadd.xlane.f32.xlu0 %v276
    %v278 = vpop.xlane.xlu0 %277
    %v279 = vsel %vm53, %v269, 0.0
    %280 = vadd.xlane.f32.xlu0 %v279
    %v281 = vpop.xlane.xlu0 %280
    %v282 = vmul.f32 %v164, 1.442695
    %v283 = vpow.pop %v282
    %v284 = vmul.f32 %v167, 1.442695
    %v285 = vpow.pop %v284
    %v286 = vmul.f32 %v170, 1.442695
    %v287 = vpow.pop %v286
    %v288 = vmul.f32 %v173, 1.442695
    %v289 = vpow.pop %v288
    %v290 = vmul.f32 %v283, %v112
    %v291 = vmul.f32 %v285, %v127
    %v292 = vmul.f32 %v287, %v142
    %v293 = vmul.f32 %v289, %v157
    %v294 = vmax.f32 %v290, 1e-07
    %v295 = vmax.f32 %v291, 1e-07
    %v296 = vmax.f32 %v292, 1e-07
    %v297 = vmax.f32 %v293, 1e-07
    %v298 = vmin.f32 %v294, 1.0
    %v299 = vmin.f32 %v295, 1.0
    %v300 = vmin.f32 %v296, 1.0
    %v301 = vmin.f32 %v297, 1.0
    %v302 = vsub.f32 %v272, %v298
    %v303 = vsub.f32 %v275, %v299
    %v304 = vsub.f32 %v278, %v300
    %v305 = vsub.f32 %v281, %v301
    %v306 = vmul.f32 %v302, 9.2103405
    %v307 = vmul.f32 %v303, 9.2103405
    %v308 = vmul.f32 %v304, 9.2103405
    %v309 = vmul.f32 %v305, 9.2103405
    %v310 = vsel %vm31, %v212, 0.0
    %v311 = vsel %vm32, %v227, 0.0
    %v312 = vsel %vm33, %v242, 0.0
    %v313 = vsel %vm34, %v257, 0.0
    %vm314 = vcmask 7168
    %v315 = vsel %vm314, %v310, 0.0
    %v316 = vsel %vm314, %v311, 0.0
    %v317 = vadd.f32 %v315, %v316
    %v318 = vsel %vm314, %v312, 0.0
    %v319 = vadd.f32 %v317, %v318
    %v320 = vsel %vm314, %v313, 0.0
    %v321 = vadd.f32 %v319, %v320
    %322 = vadd.xlane.f32.xlu0 %v321
    %v323 = vpop.xlane.xlu0 %322
    %v324 = vrot.slane %v323, 4
    %v325 = vadd.f32 %v323, %v324
    %v326 = vrot.slane %v325, 2
    %v327 = vadd.f32 %v325, %v326
    %v328 = vrot.slane %v327, 1
    %v329 = vadd.f32 %v327, %v328
    %s330 = vtos %v329
    %v331 = vsel %vm31, %v306, 0.0
    %v332 = vsel %vm32, %v307, 0.0
    %v333 = vsel %vm33, %v308, 0.0
    %v334 = vsel %vm34, %v309, 0.0
    %v335 = vsel %vm314, %v331, 0.0
    %v336 = vsel %vm314, %v332, 0.0
    %v337 = vadd.f32 %v335, %v336
    %v338 = vsel %vm314, %v333, 0.0
    %v339 = vadd.f32 %v337, %v338
    %v340 = vsel %vm314, %v334, 0.0
    %v341 = vadd.f32 %v339, %v340
    %342 = vadd.xlane.f32.xlu0 %v341
    %v343 = vpop.xlane.xlu0 %342
    %v344 = vrot.slane %v343, 4
    %v345 = vadd.f32 %v343, %v344
    %v346 = vrot.slane %v345, 2
    %v347 = vadd.f32 %v345, %v346
    %v348 = vrot.slane %v347, 1
    %v349 = vadd.f32 %v347, %v348
    %s350 = vtos %v349
    %s351 = sadd.f32 %s330, %s350
    %v352 = vstv %s351
    %353 = vst [vmem:[#allocation2] sm:$0xff] %v352
    // Predicated region
    $region10: #{tpu_custom_call.1} parent=1 // pred_check
      _
    $region11: #{tpu_custom_call.1} parent=1 // pred_check_branch
      %355 = sbr.rel (0) target = $region13
    $region12: #{tpu_custom_call.1} parent=1 // pred_region
      %357 = vsyncadd [#allocation3], 0
      %s359 = sshll.u32 [#allocation2], 4
      %s360 = int_to_ptr.vmem [resolvable:$true] %s359
      %s361 = sshll.u32 %s2, 4
      %s362 = int_to_ptr.hbm [resolvable:$true] %s361
      %364 = dma.vmem_to_hbm [thread:$0]  %s360, 128, %s362, [#allocation3]
    $region13: #{tpu_custom_call.1} parent=1 // pred_fallthru
      _
    // Predicated region
    $region14: #{tpu_custom_call.1} parent=1 // pred_check
      _
    $region15: #{tpu_custom_call.1} parent=1 // pred_check_branch
      %366 = sbr.rel (0) target = $region17
    $region16: #{tpu_custom_call.1} parent=1 // pred_region
      %368 = dma.done [#allocation3], 128
    $region17: #{tpu_custom_call.1} parent=1 // pred_fallthru
      _
    %369 = vsyncpa [#allocation3], 1

</llo_original>
